<compile_context>
chip_gen: v7x
topology: tpu7x:2x2x1
jax: 0.10.0
libtpu: 0.0.40
codegen_flags: <defaults>
</compile_context>

<pallas_src>
import functools

import jax
import jax.numpy as jnp
import numpy as np
from jax.experimental import pallas as pl
from jax.experimental.pallas import tpu as pltpu

MAX_K = 16
FOLD = 8            # sublane fold factor of the vocab axis
NSPLIT = 2          # leading "parallel" grid axis (dual-TC split on v7x)
NEG_F32 = float(jnp.finfo(jnp.float32).min)
_INT32_MAX = int(np.iinfo(np.int32).max)


def _ceil_div(a, b):
    return -(-a // b)


def _topk_stream_kernel(max_k, blocks_per_split,
                        logits_ref,   # (R, TV) f32  folded logits tile
                        tc_ref,       # (R, TV) i8   repetition ("seen") mask
                        pen_ref,      # (R, 1)  f32  penalty
                        ipen_ref,     # (R, 1)  f32  1 / penalty
                        itemp_ref,    # (R, 1)  f32  1 / temperature
                        base_ref,     # (R, 1)  i32  per-row vocab base offset
                        topv_ref,     # (R, K)  f32  out: running top-K values
                        topi_ref):    # (R, K)  i32  out: running top-K indices
    R, TV = logits_ref.shape
    K = max_k
    c = pl.program_id(0)          # TC / vocab-range split
    v = pl.program_id(1)          # vocab block within the split

    k_iota = jax.lax.broadcasted_iota(jnp.int32, (R, K), 1)
    NEG_INF = jnp.float32(-jnp.inf)
    BIG_I = jnp.int32(_INT32_MAX)

    # ---- init running top-K at the first block of this split ----
    @pl.when(v == 0)
    def _():
        topv_ref[...] = jnp.full((R, K), -jnp.inf, jnp.float32)
        # negative sentinels: unique per row, never collide with a vocab index
        topi_ref[...] = -(k_iota + 1)

    # ---- fused repetition penalty + temperature (common path) ----
    logits = logits_ref[...]
    repeated = tc_ref[...] != 0                                     # int8 compare
    factor = jnp.where(repeated,
                       jnp.where(logits > 0.0, ipen_ref[...], pen_ref[...]),
                       1.0)
    blk_v = (logits * factor) * itemp_ref[...]                      # (R, TV)

    # ---- skip gate: merge only if some row has a new top-K candidate ----
    thresh = jnp.min(topv_ref[...], axis=1, keepdims=True)          # running K-th best
    blk_max = jnp.max(blk_v, axis=1, keepdims=True)                 # (R, 1)
    hit = jnp.where(blk_max > thresh, jnp.int32(1), jnp.int32(0))
    need_merge = jnp.max(hit) > 0

    @pl.when(need_merge)
    def _():
        lane = jax.lax.broadcasted_iota(jnp.int32, (R, TV), 1)
        gidx = base_ref[...] + (c * blocks_per_split + v) * TV + lane

        acc_i = topi_ref[...]

        # TODO(synk): per review, a concat(acc, blk) single-array merge would
        # halve the per-step XLU reductions; kept two-array since the skip gate
        # makes merges rare and the acc side is a single vreg.
        def extract(t, carry):
            acc_v, blk, new_v, new_i = carry
            m = jnp.maximum(jnp.max(acc_v, axis=1, keepdims=True),
                            jnp.max(blk, axis=1, keepdims=True))    # (R, 1)
            # smallest global index among maxima (lax.top_k tie-break)
            i1 = jnp.min(jnp.where(acc_v == m, acc_i, BIG_I), axis=1, keepdims=True)
            i2 = jnp.min(jnp.where(blk == m, gidx, BIG_I), axis=1, keepdims=True)
            idx = jnp.minimum(i1, i2)
            new_v = jnp.where(k_iota == t, m, new_v)
            new_i = jnp.where(k_iota == t, idx, new_i)
            # knock out the selected element (indices are globally unique)
            acc_v = jnp.where(acc_i == idx, NEG_INF, acc_v)
            blk = jnp.where(gidx == idx, NEG_INF, blk)
            return acc_v, blk, new_v, new_i

        init = (topv_ref[...], blk_v,
                jnp.full((R, K), NEG_INF, jnp.float32),
                jnp.zeros((R, K), jnp.int32))
        _, _, new_v, new_i = jax.lax.fori_loop(0, K, extract, init)
        topv_ref[...] = new_v
        topi_ref[...] = new_i


def _plan_tiling(batch, vocab, max_lane_elems=16384, max_tv=2048):
    """Pick the lane tile width TV and padding for the folded vocab stream."""
    rows = batch * FOLD
    per_row = _ceil_div(vocab, FOLD)
    tv_needed = _ceil_div(per_row, 128) * 128
    tv_cap = max(128, (max_lane_elems // rows) // 128 * 128)  # bound vreg carry
    tv = max(128, min(tv_needed, tv_cap, max_tv))
    blocks_per_split = _ceil_div(_ceil_div(vocab, FOLD * tv), NSPLIT)
    vpad8 = NSPLIT * blocks_per_split * tv                    # per-row padded width
    return rows, tv, blocks_per_split, vpad8


def multinomial_sampling(logits, last_token_index, temperature, top_k, top_p,
                         pre_generated_randoms, repetition_penalty, token_count,
                         max_k=MAX_K):
    """JAX/Pallas implementation of MultinomialSampling.forward -> (B, 1) int32."""
    B, T, V = logits.shape
    assert T == 1, "token-generation sequence length must be 1"
    assert 1 <= max_k <= 128  # relaxed: no vocab divisibility requirement

    rows, TV, bps, vpad8 = _plan_tiling(B, V)
    Vpad = FOLD * vpad8

    # ---- fold / pad the two (B, V) streams (pad + row-major reshape) ----
    logits2d = logits[:, 0, :].astype(jnp.float32)
    logits_f = jnp.pad(logits2d, ((0, 0), (0, Vpad - V)),
                       constant_values=-jnp.inf).reshape(rows, vpad8)
    tc_f = jnp.pad((token_count > 0).astype(jnp.int8),
                   ((0, 0), (0, Vpad - V))).reshape(rows, vpad8)

    pen = repetition_penalty.astype(jnp.float32)
    inv_pen = 1.0 / pen
    inv_temp = 1.0 / temperature.astype(jnp.float32)
    pen_f = jnp.repeat(pen, FOLD, axis=0)
    ipen_f = jnp.repeat(inv_pen, FOLD, axis=0)
    itemp_f = jnp.repeat(inv_temp, FOLD, axis=0)
    row_base = jnp.tile(jnp.arange(FOLD, dtype=jnp.int32) * vpad8, B).reshape(rows, 1)

    kernel = functools.partial(_topk_stream_kernel, max_k, bps)
    grid_spec = pltpu.PrefetchScalarGridSpec(
        num_scalar_prefetch=0,
        grid=(NSPLIT, bps),
        in_specs=[
            # TODO(synk): sweep pipeline_mode=pl.Buffered(3) once HBM-bound.
            pl.BlockSpec((rows, TV), lambda c, v: (0, c * bps + v)),
            pl.BlockSpec((rows, TV), lambda c, v: (0, c * bps + v)),
            pl.BlockSpec((rows, 1), lambda c, v: (0, 0)),
            pl.BlockSpec((rows, 1), lambda c, v: (0, 0)),
            pl.BlockSpec((rows, 1), lambda c, v: (0, 0)),
            pl.BlockSpec((rows, 1), lambda c, v: (0, 0)),
        ],
        out_specs=[
            pl.BlockSpec((None, rows, max_k), lambda c, v: (c, 0, 0)),
            pl.BlockSpec((None, rows, max_k), lambda c, v: (c, 0, 0)),
        ],
    )
    topv, topi = pl.pallas_call(
        kernel,
        out_shape=(jax.ShapeDtypeStruct((NSPLIT, rows, max_k), jnp.float32),
                   jax.ShapeDtypeStruct((NSPLIT, rows, max_k), jnp.int32)),
        grid_spec=grid_spec,
        compiler_params=pltpu.CompilerParams(
            dimension_semantics=("parallel", "arbitrary"),
            vmem_limit_bytes=32 * 1024 * 1024),
    )(logits_f, tc_f, pen_f, ipen_f, itemp_f, row_base)

    # ---- O(B*K) epilogue in plain JAX (tiny vs. the (B, V) stream) ----
    # Arrange candidates so ascending position == ascending global vocab index,
    # matching torch.topk / lax.top_k tie-breaking.
    cand_v = topv.reshape(NSPLIT, B, FOLD, max_k).transpose(1, 2, 0, 3)
    cand_v = cand_v.reshape(B, FOLD * NSPLIT * max_k)
    cand_i = topi.reshape(NSPLIT, B, FOLD, max_k).transpose(1, 2, 0, 3)
    cand_i = cand_i.reshape(B, FOLD * NSPLIT * max_k)
    top_vals, pos = jax.lax.top_k(cand_v, max_k)
    top_idx = jnp.take_along_axis(cand_i, pos, axis=1)

    kio = jnp.arange(max_k, dtype=jnp.int32)[None, :]
    k_eff = jnp.maximum(top_k.astype(jnp.int32), 1)
    masked = jnp.where(kio < k_eff, top_vals, NEG_F32)
    mx = jnp.max(masked, axis=1, keepdims=True)
    e = jnp.exp(masked - mx)
    probs = e / jnp.sum(e, axis=1, keepdims=True)

    u = jnp.take_along_axis(pre_generated_randoms.astype(jnp.float32),
                            last_token_index.astype(jnp.int32), axis=1)
    u = u * jnp.clip(top_p.astype(jnp.float32), 0.0, 1.0)
    cdf = jnp.cumsum(probs, axis=1)
    sampled = jnp.minimum(
        jnp.sum((cdf < u).astype(jnp.int32), axis=1, keepdims=True), max_k - 1)
    token = jnp.take_along_axis(top_idx, sampled, axis=1).astype(jnp.int32)
    # Guard: a row with < K finite logits could surface a sentinel index.
    return jnp.clip(token, 0, V - 1)


def _reference(logits, last_idx, temperature, top_k, top_p, randoms, penalty,
               token_count, max_k=MAX_K):
    """Pure-JAX reference mirroring MultinomialSampling.forward."""
    l = logits[:, 0, :].astype(jnp.float32)
    pen = penalty.astype(jnp.float32)
    inv_pen = 1.0 / pen
    inv_temp = 1.0 / temperature.astype(jnp.float32)
    factor = jnp.where(token_count > 0, jnp.where(l > 0.0, inv_pen, pen), 1.0)
    l = (l * factor) * inv_temp
    top_vals, top_idx = jax.lax.top_k(l, max_k)
    top_idx = top_idx.astype(jnp.int32)
    kio = jnp.arange(max_k, dtype=jnp.int32)[None, :]
    k_eff = jnp.maximum(top_k.astype(jnp.int32), 1)
    masked = jnp.where(kio < k_eff, top_vals, NEG_F32)
    mx = jnp.max(masked, axis=1, keepdims=True)
    e = jnp.exp(masked - mx)
    probs = e / jnp.sum(e, axis=1, keepdims=True)
    u = jnp.take_along_axis(randoms.astype(jnp.float32),
                            last_idx.astype(jnp.int32), axis=1)
    u = u * jnp.clip(top_p.astype(jnp.float32), 0.0, 1.0)
    cdf = jnp.cumsum(probs, axis=1)
    idx = jnp.minimum(jnp.sum((cdf < u).astype(jnp.int32), axis=1, keepdims=True),
                      max_k - 1)
    return jnp.take_along_axis(top_idx, idx, axis=1)


if __name__ == "__main__":
    B, V, S = 2, 256, 8  # batch, vocab, max_seq_length

    key = jax.random.PRNGKey(0)
    k1, k2, k3 = jax.random.split(key, 3)

    logits = jax.random.normal(k1, (B, 1, V), dtype=jnp.float32) * 3.0
    last_token_index = jnp.array([[3], [5]], dtype=jnp.int32)
    temperature = jnp.array([[0.7], [1.3]], dtype=jnp.float32)
    top_k = jnp.array([[8], [16]], dtype=jnp.int32)
    top_p = jnp.array([[0.9], [1.2]], dtype=jnp.float32)   # 1.2 exercises the clamp
    pre_generated_randoms = jax.random.uniform(k2, (B, S), dtype=jnp.float32)
    repetition_penalty = jnp.array([[1.2], [1.0]], dtype=jnp.float32)
    token_count = jax.random.randint(k3, (B, V), 0, 3, dtype=jnp.int32)

    next_token = multinomial_sampling(
        logits, last_token_index, temperature, top_k, top_p,
        pre_generated_randoms, repetition_penalty, token_count)
    next_token = jax.block_until_ready(next_token)

    ref = _reference(logits, last_token_index, temperature, top_k, top_p,
                     pre_generated_randoms, repetition_penalty, token_count)

    assert next_token.shape == (B, 1) and next_token.dtype == jnp.int32
    assert bool(jnp.all((next_token >= 0) & (next_token < V)))
    np.testing.assert_array_equal(np.asarray(next_token), np.asarray(ref))

    print("KERNEL_OK")
</pallas_src>

<mosaic_0001>
module attributes {stable_mosaic.version = 11 : i64} {
  func.func @_topk_stream_kernel(%arg0: i32, %arg1: i32, %arg2: memref<16x128xf32, #tpu.memory_space<vmem>>, %arg3: memref<16x128xi8, #tpu.memory_space<vmem>>, %arg4: memref<16x1xf32, #tpu.memory_space<vmem>>, %arg5: memref<16x1xf32, #tpu.memory_space<vmem>>, %arg6: memref<16x1xf32, #tpu.memory_space<vmem>>, %arg7: memref<16x1xi32, #tpu.memory_space<vmem>>, %arg8: memref<1x16x16xf32, #tpu.memory_space<vmem>>, %arg9: memref<1x16x16xi32, #tpu.memory_space<vmem>>) attributes {dimension_semantics = [#tpu.dimension_semantics<parallel>, #tpu.dimension_semantics<arbitrary>], iteration_bounds = array<i64: 2, 1>, scalar_prefetch = 0 : i64, scratch_operands = 0 : i64, tpu.core_type = #tpu.core_type<tc>, window_params = [{transform_indices = @transform_0, window_bounds = array<i64: 16, 128>}, {transform_indices = @transform_1, window_bounds = array<i64: 16, 128>}, {pipeline_mode = #tpu.pipeline_mode<synchronous>, transform_indices = @transform_2, window_bounds = array<i64: 16, 1>}, {pipeline_mode = #tpu.pipeline_mode<synchronous>, transform_indices = @transform_3, window_bounds = array<i64: 16, 1>}, {pipeline_mode = #tpu.pipeline_mode<synchronous>, transform_indices = @transform_4, window_bounds = array<i64: 16, 1>}, {pipeline_mode = #tpu.pipeline_mode<synchronous>, transform_indices = @transform_5, window_bounds = array<i64: 16, 1>}, {transform_indices = @transform_6, window_bounds = array<i64: 1, 16, 16>}, {transform_indices = @transform_7, window_bounds = array<i64: 1, 16, 16>}]} {
    %0 = tpu.iota {dimensions = array<i32: 1>} : vector<16x16xi32>
    %c0_i32 = arith.constant 0 : i32
    %1 = arith.cmpi eq, %arg1, %c0_i32 : i32
    %2 = arith.extui %1 : i1 to i32
    %c0_i32_0 = arith.constant 0 : i32
    %3 = arith.cmpi ne, %2, %c0_i32_0 : i32
    scf.if %3 {
      %cst_21 = arith.constant 0xFF800000 : f32
      %40 = vector.broadcast %cst_21 : f32 to vector<16x16xf32>
      %c0_22 = arith.constant 0 : index
      %c0_23 = arith.constant 0 : index
      %c0_24 = arith.constant 0 : index
      %41 = vector.load %arg8[%c0_22, %c0_23, %c0_24] : memref<1x16x16xf32, #tpu.memory_space<vmem>>, vector<1x16x16xf32>
      %42 = vector.shape_cast %41 : vector<1x16x16xf32> to vector<16x16xf32>
      %43 = vector.shape_cast %40 : vector<16x16xf32> to vector<1x16x16xf32>
      tpu.vector_store %arg8[%c0_22, %c0_23, %c0_24], %43 {strides = array<i32>} : memref<1x16x16xf32, #tpu.memory_space<vmem>>, vector<1x16x16xf32>,
      %c1_i32_25 = arith.constant 1 : i32
      %44 = vector.broadcast %c1_i32_25 : i32 to vector<16x16xi32>
      %45 = arith.addi %0, %44 : vector<16x16xi32>
      %c0_i32_26 = arith.constant 0 : i32
      %46 = vector.broadcast %c0_i32_26 : i32 to vector<16x16xi32>
      %47 = arith.subi %46, %45 : vector<16x16xi32>
      %c0_27 = arith.constant 0 : index
      %c0_28 = arith.constant 0 : index
      %c0_29 = arith.constant 0 : index
      %48 = vector.load %arg9[%c0_27, %c0_28, %c0_29] : memref<1x16x16xi32, #tpu.memory_space<vmem>>, vector<1x16x16xi32>
      %49 = vector.shape_cast %48 : vector<1x16x16xi32> to vector<16x16xi32>
      %50 = vector.shape_cast %47 : vector<16x16xi32> to vector<1x16x16xi32>
      tpu.vector_store %arg9[%c0_27, %c0_28, %c0_29], %50 {strides = array<i32>} : memref<1x16x16xi32, #tpu.memory_space<vmem>>, vector<1x16x16xi32>,
    } else {
    }
    %c0 = arith.constant 0 : index
    %c0_1 = arith.constant 0 : index
    %4 = vector.load %arg2[%c0, %c0_1] : memref<16x128xf32, #tpu.memory_space<vmem>>, vector<16x128xf32>
    %c0_2 = arith.constant 0 : index
    %c0_3 = arith.constant 0 : index
    %5 = vector.load %arg3[%c0_2, %c0_3] : memref<16x128xi8, #tpu.memory_space<vmem>>, vector<16x128xi8>
    %c0_i8 = arith.constant 0 : i8
    %6 = vector.broadcast %c0_i8 : i8 to vector<16x128xi8>
    %7 = arith.cmpi ne, %5, %6 : vector<16x128xi8>
    %cst = arith.constant 0.000000e+00 : f32
    %8 = vector.broadcast %cst : f32 to vector<16x128xf32>
    %9 = arith.cmpf ogt, %4, %8 : vector<16x128xf32>
    %c0_4 = arith.constant 0 : index
    %c0_5 = arith.constant 0 : index
    %10 = vector.load %arg5[%c0_4, %c0_5] : memref<16x1xf32, #tpu.memory_space<vmem>>, vector<16x1xf32>
    %c0_6 = arith.constant 0 : index
    %c0_7 = arith.constant 0 : index
    %11 = vector.load %arg4[%c0_6, %c0_7] : memref<16x1xf32, #tpu.memory_space<vmem>>, vector<16x1xf32>
    %12 = vector.shape_cast %10 : vector<16x1xf32> to vector<16x1xf32>
    %13 = vector.broadcast %12 : vector<16x1xf32> to vector<16x128xf32>
    %14 = vector.shape_cast %11 : vector<16x1xf32> to vector<16x1xf32>
    %15 = vector.broadcast %14 : vector<16x1xf32> to vector<16x128xf32>
    %16 = arith.select %9, %13, %15 : vector<16x128xi1>, vector<16x128xf32>
    %cst_8 = arith.constant 1.000000e+00 : f32
    %17 = vector.broadcast %cst_8 : f32 to vector<16x128xf32>
    %18 = arith.select %7, %16, %17 : vector<16x128xi1>, vector<16x128xf32>
    %19 = arith.mulf %4, %18 : vector<16x128xf32>
    %c0_9 = arith.constant 0 : index
    %c0_10 = arith.constant 0 : index
    %20 = vector.load %arg6[%c0_9, %c0_10] : memref<16x1xf32, #tpu.memory_space<vmem>>, vector<16x1xf32>
    %21 = vector.broadcast %20 : vector<16x1xf32> to vector<16x128xf32>
    %22 = arith.mulf %19, %21 : vector<16x128xf32>
    %c0_11 = arith.constant 0 : index
    %c0_12 = arith.constant 0 : index
    %c0_13 = arith.constant 0 : index
    %23 = vector.load %arg8[%c0_11, %c0_12, %c0_13] : memref<1x16x16xf32, #tpu.memory_space<vmem>>, vector<1x16x16xf32>
    %24 = vector.shape_cast %23 : vector<1x16x16xf32> to vector<16x16xf32>
    %cst_14 = arith.constant dense<0x7F800000> : vector<16xf32>
    %25 = vector.multi_reduction <minimumf>, %24, %cst_14 [1] : vector<16x16xf32> to vector<16xf32>
    %26 = vector.shape_cast %25 : vector<16xf32> to vector<16x1xf32>
    %cst_15 = arith.constant dense<0xFF800000> : vector<16xf32>
    %27 = vector.multi_reduction <maximumf>, %22, %cst_15 [1] : vector<16x128xf32> to vector<16xf32>
    %28 = vector.shape_cast %27 : vector<16xf32> to vector<16x1xf32>
    %29 = arith.cmpf ogt, %28, %26 : vector<16x1xf32>
    %c1_i32 = arith.constant 1 : i32
    %c0_i32_16 = arith.constant 0 : i32
    %30 = vector.broadcast %c1_i32 : i32 to vector<16x1xi32>
    %31 = vector.broadcast %c0_i32_16 : i32 to vector<16x1xi32>
    %32 = arith.select %29, %30, %31 : vector<16x1xi1>, vector<16x1xi32>
    %33 = vector.shape_cast %32 : vector<16x1xi32> to vector<1x16x1xi32>
    %cst_17 = arith.constant dense<-2147483648> : vector<1xi32>
    %34 = vector.multi_reduction <maxsi>, %33, %cst_17 [1, 2] : vector<1x16x1xi32> to vector<1xi32>
    %35 = vector.shape_cast %34 : vector<1xi32> to vector<1x1x1xi32>
    %36 = vector.extract %35[0, 0, 0] : i32 from vector<1x1x1xi32>
    %c0_i32_18 = arith.constant 0 : i32
    %37 = arith.cmpi sgt, %36, %c0_i32_18 : i32
    %38 = arith.extui %37 : i1 to i32
    %cst_19 = arith.constant 0xFF800000 : f32
    %c2147483647_i32 = arith.constant 2147483647 : i32
    %c0_i32_20 = arith.constant 0 : i32
    %39 = arith.cmpi ne, %38, %c0_i32_20 : i32
    scf.if %39 {
      %40 = tpu.iota {dimensions = array<i32: 1>} : vector<16x128xi32>
      %c0_21 = arith.constant 0 : index
      %c0_22 = arith.constant 0 : index
      %41 = vector.load %arg7[%c0_21, %c0_22] : memref<16x1xi32, #tpu.memory_space<vmem>>, vector<16x1xi32>
      %c1_i32_23 = arith.constant 1 : i32
      %42 = arith.muli %arg0, %c1_i32_23 : i32
      %43 = arith.addi %42, %arg1 : i32
      %c128_i32 = arith.constant 128 : i32
      %44 = arith.muli %43, %c128_i32 : i32
      %45 = vector.broadcast %44 : i32 to vector<16x1xi32>
      %46 = arith.addi %41, %45 : vector<16x1xi32>
      %47 = vector.broadcast %46 : vector<16x1xi32> to vector<16x128xi32>
      %48 = arith.addi %47, %40 : vector<16x128xi32>
      %c0_24 = arith.constant 0 : index
      %c0_25 = arith.constant 0 : index
      %c0_26 = arith.constant 0 : index
      %49 = vector.load %arg9[%c0_24, %c0_25, %c0_26] : memref<1x16x16xi32, #tpu.memory_space<vmem>>, vector<1x16x16xi32>
      %50 = vector.shape_cast %49 : vector<1x16x16xi32> to vector<16x16xi32>
      %c0_27 = arith.constant 0 : index
      %c0_28 = arith.constant 0 : index
      %c0_29 = arith.constant 0 : index
      %51 = vector.load %arg8[%c0_27, %c0_28, %c0_29] : memref<1x16x16xf32, #tpu.memory_space<vmem>>, vector<1x16x16xf32>
      %52 = vector.shape_cast %51 : vector<1x16x16xf32> to vector<16x16xf32>
      %53 = vector.broadcast %cst_19 : f32 to vector<16x16xf32>
      %c0_i32_30 = arith.constant 0 : i32
      %54 = vector.broadcast %c0_i32_30 : i32 to vector<16x16xi32>
      %c0_i32_31 = arith.constant 0 : i32
      %c16_i32 = arith.constant 16 : i32
      %55 = arith.addi %c0_i32_31, %c16_i32 : i32
      %c1_i32_32 = arith.constant 1 : i32
      %56:4 = scf.for %arg10 = %c0_i32_31 to %55 step %c1_i32_32 iter_args(%arg11 = %52, %arg12 = %22, %arg13 = %53, %arg14 = %54) -> (vector<16x16xf32>, vector<16x128xf32>, vector<16x16xf32>, vector<16x16xi32>)  : i32 {
        %cst_40 = arith.constant dense<0xFF800000> : vector<16xf32>
        %63 = vector.multi_reduction <maximumf>, %arg11, %cst_40 [1] : vector<16x16xf32> to vector<16xf32>
        %64 = vector.shape_cast %63 : vector<16xf32> to vector<16x1xf32>
        %cst_41 = arith.constant dense<0xFF800000> : vector<16xf32>
        %65 = vector.multi_reduction <maximumf>, %arg12, %cst_41 [1] : vector<16x128xf32> to vector<16xf32>
        %66 = vector.shape_cast %65 : vector<16xf32> to vector<16x1xf32>
        %67 = arith.maximumf %64, %66 : vector<16x1xf32>
        %68 = vector.broadcast %67 : vector<16x1xf32> to vector<16x16xf32>
        %69 = arith.cmpf oeq, %arg11, %68 : vector<16x16xf32>
        %70 = vector.broadcast %c2147483647_i32 : i32 to vector<16x16xi32>
        %71 = arith.select %69, %50, %70 : vector<16x16xi1>, vector<16x16xi32>
        %cst_42 = arith.constant dense<2147483647> : vector<16xi32>
        %72 = vector.multi_reduction <minsi>, %71, %cst_42 [1] : vector<16x16xi32> to vector<16xi32>
        %73 = vector.shape_cast %72 : vector<16xi32> to vector<16x1xi32>
        %74 = vector.broadcast %67 : vector<16x1xf32> to vector<16x128xf32>
        %75 = arith.cmpf oeq, %arg12, %74 : vector<16x128xf32>
        %76 = vector.broadcast %c2147483647_i32 : i32 to vector<16x128xi32>
        %77 = arith.select %75, %48, %76 : vector<16x128xi1>, vector<16x128xi32>
        %cst_43 = arith.constant dense<2147483647> : vector<16xi32>
        %78 = vector.multi_reduction <minsi>, %77, %cst_43 [1] : vector<16x128xi32> to vector<16xi32>
        %79 = vector.shape_cast %78 : vector<16xi32> to vector<16x1xi32>
        %80 = arith.minsi %73, %79 : vector<16x1xi32>
        %81 = vector.broadcast %arg10 : i32 to vector<16x16xi32>
        %82 = arith.cmpi eq, %0, %81 : vector<16x16xi32>
        %83 = vector.shape_cast %67 : vector<16x1xf32> to vector<16x1xf32>
        %84 = vector.broadcast %83 : vector<16x1xf32> to vector<16x16xf32>
        %85 = arith.select %82, %84, %arg13 : vector<16x16xi1>, vector<16x16xf32>
        %86 = vector.broadcast %arg10 : i32 to vector<16x16xi32>
        %87 = arith.cmpi eq, %0, %86 : vector<16x16xi32>
        %88 = vector.shape_cast %80 : vector<16x1xi32> to vector<16x1xi32>
        %89 = vector.broadcast %88 : vector<16x1xi32> to vector<16x16xi32>
        %90 = arith.select %87, %89, %arg14 : vector<16x16xi1>, vector<16x16xi32>
        %91 = vector.broadcast %80 : vector<16x1xi32> to vector<16x16xi32>
        %92 = arith.cmpi eq, %50, %91 : vector<16x16xi32>
        %93 = vector.broadcast %cst_19 : f32 to vector<16x16xf32>
        %94 = arith.select %92, %93, %arg11 : vector<16x16xi1>, vector<16x16xf32>
        %95 = vector.broadcast %80 : vector<16x1xi32> to vector<16x128xi32>
        %96 = arith.cmpi eq, %48, %95 : vector<16x128xi32>
        %97 = vector.broadcast %cst_19 : f32 to vector<16x128xf32>
        %98 = arith.select %96, %97, %arg12 : vector<16x128xi1>, vector<16x128xf32>
        scf.yield %94, %98, %85, %90 : vector<16x16xf32>, vector<16x128xf32>, vector<16x16xf32>, vector<16x16xi32>
      }
      %c16_i32_33 = arith.constant 16 : i32
      %c0_34 = arith.constant 0 : index
      %c0_35 = arith.constant 0 : index
      %c0_36 = arith.constant 0 : index
      %57 = vector.load %arg8[%c0_34, %c0_35, %c0_36] : memref<1x16x16xf32, #tpu.memory_space<vmem>>, vector<1x16x16xf32>
      %58 = vector.shape_cast %57 : vector<1x16x16xf32> to vector<16x16xf32>
      %59 = vector.shape_cast %56#2 : vector<16x16xf32> to vector<1x16x16xf32>
      tpu.vector_store %arg8[%c0_34, %c0_35, %c0_36], %59 {strides = array<i32>} : memref<1x16x16xf32, #tpu.memory_space<vmem>>, vector<1x16x16xf32>,
      %c0_37 = arith.constant 0 : index
      %c0_38 = arith.constant 0 : index
      %c0_39 = arith.constant 0 : index
      %60 = vector.load %arg9[%c0_37, %c0_38, %c0_39] : memref<1x16x16xi32, #tpu.memory_space<vmem>>, vector<1x16x16xi32>
      %61 = vector.shape_cast %60 : vector<1x16x16xi32> to vector<16x16xi32>
      %62 = vector.shape_cast %56#3 : vector<16x16xi32> to vector<1x16x16xi32>
      tpu.vector_store %arg9[%c0_37, %c0_38, %c0_39], %62 {strides = array<i32>} : memref<1x16x16xi32, #tpu.memory_space<vmem>>, vector<1x16x16xi32>,
    } else {
    }
    return
  }
  func.func @transform_0(%arg0: i32, %arg1: i32) -> (i32, i32) {
    %c1_i32 = arith.constant 1 : i32
    %0 = arith.muli %arg0, %c1_i32 : i32
    %1 = arith.addi %0, %arg1 : i32
    %c0_i32 = arith.constant 0 : i32
    %c0_i32_0 = arith.constant 0 : i32
    return %c0_i32, %1 : i32, i32
  }
  func.func @transform_1(%arg0: i32, %arg1: i32) -> (i32, i32) {
    %c1_i32 = arith.constant 1 : i32
    %0 = arith.muli %arg0, %c1_i32 : i32
    %1 = arith.addi %0, %arg1 : i32
    %c0_i32 = arith.constant 0 : i32
    %c0_i32_0 = arith.constant 0 : i32
    return %c0_i32, %1 : i32, i32
  }
  func.func @transform_2(%arg0: i32, %arg1: i32) -> (i32, i32) {
    %c0_i32 = arith.constant 0 : i32
    %c0_i32_0 = arith.constant 0 : i32
    %c0_i32_1 = arith.constant 0 : i32
    return %c0_i32, %c0_i32_0 : i32, i32
  }
  func.func @transform_3(%arg0: i32, %arg1: i32) -> (i32, i32) {
    %c0_i32 = arith.constant 0 : i32
    %c0_i32_0 = arith.constant 0 : i32
    %c0_i32_1 = arith.constant 0 : i32
    return %c0_i32, %c0_i32_0 : i32, i32
  }
  func.func @transform_4(%arg0: i32, %arg1: i32) -> (i32, i32) {
    %c0_i32 = arith.constant 0 : i32
    %c0_i32_0 = arith.constant 0 : i32
    %c0_i32_1 = arith.constant 0 : i32
    return %c0_i32, %c0_i32_0 : i32, i32
  }
  func.func @transform_5(%arg0: i32, %arg1: i32) -> (i32, i32) {
    %c0_i32 = arith.constant 0 : i32
    %c0_i32_0 = arith.constant 0 : i32
    %c0_i32_1 = arith.constant 0 : i32
    return %c0_i32, %c0_i32_0 : i32, i32
  }
  func.func @transform_6(%arg0: i32, %arg1: i32) -> (i32, i32, i32) {
    %c0_i32 = arith.constant 0 : i32
    %c0_i32_0 = arith.constant 0 : i32
    %c0_i32_1 = arith.constant 0 : i32
    return %arg0, %c0_i32, %c0_i32_0 : i32, i32, i32
  }
  func.func @transform_7(%arg0: i32, %arg1: i32) -> (i32, i32, i32) {
    %c0_i32 = arith.constant 0 : i32
    %c0_i32_0 = arith.constant 0 : i32
    %c0_i32_1 = arith.constant 0 : i32
    return %arg0, %c0_i32, %c0_i32_0 : i32, i32, i32
  }
}

</mosaic_0001>

<llo_original>
// kernel: tpu_custom_call.1
$region0: #{tpu_custom_call.1}
  #allocation0 [shape = 'u32[]', space=smem, size = 0x4, offset = 0x4, fixed_abs, tag = 'smem constant byte address 0x4 - core index']
  #allocation1 [shape = 'u32[144,128]{1,0:T(1,128)}', space=vmem, size = 0x12000, scoped, tag = 'internal scratch']
  %s0 = inlined_call_operand.vmem [shape: f32[16,256], index: 0, kind: input, shape index: {}]
  %s1 = inlined_call_operand.vmem [shape: s8[16,256], index: 1, kind: input, shape index: {}]
  %s2 = inlined_call_operand.vmem [shape: f32[16,1], index: 2, kind: input, shape index: {}]
  %s3 = inlined_call_operand.vmem [shape: f32[16,1], index: 3, kind: input, shape index: {}]
  %s4 = inlined_call_operand.vmem [shape: f32[16,1], index: 4, kind: input, shape index: {}]
  %s5 = inlined_call_operand.vmem [shape: s32[16,1], index: 5, kind: input, shape index: {}]
  %s6 = inlined_call_operand.hbm [shape: f32[2,16,16], index: 6, kind: output, shape index: {0}]
  %s7 = inlined_call_operand.hbm [shape: s32[2,16,16], index: 7, kind: output, shape index: {1}]
  %8 = xla_tuple %s6, %s7
  %s9 = sld [smem:[#allocation0]]
  $region152: #{tpu_custom_call.1} parent=0
    _
  %s11 = ssub.s32 1, %s9
  %s12 = scalar_select 0, %s11, %s9
  $region1: #{tpu_custom_call.1} parent=0
    #allocation2 [shape = 'u8[16384]{0}', space=vmem, size = 0x4000, scoped, tag = 'input window, operand 0']
    #allocation3 [shape = 'u8[4096]{0}', space=vmem, size = 0x1000, scoped, tag = 'input window, operand 1']
    #allocation4 [shape = 'u8[16384]{0}', space=vmem, size = 0x4000, scoped, tag = 'output window, operand 0']
    #allocation5 [shape = 's32[2]{0}', space=sflag, size = 0x8, scoped, tag = 'scoped memory for tpu_custom_call.1']
    #allocation6 [shape = 'u8[16384]{0}', space=vmem, size = 0x4000, scoped, tag = 'output window, operand 1']
    #allocation7 [shape = 's32[2]{0}', space=sflag, size = 0x8, scoped, tag = 'scoped memory for tpu_custom_call.1']
    %13 = vsyncpa [#allocation5], 0
    %s14 = scalar_lea.sflag [#allocation5], 1
    %15 = vsyncpa %s14, 0
    %16 = vsyncpa [#allocation7], 0
    %s17 = scalar_lea.sflag [#allocation7], 1
    %18 = vsyncpa %s17, 0
    loop: start=0, step=1, limit=4
    $region2: #{tpu_custom_call.1} parent=1 // loop_pre_header
      _
    $region3: #{tpu_custom_call.1} parent=1 // loop_header
      %s20 = sphi 0, %s24
      %p21 = scmp.ge.s32.totalorder %s20, 4
      %s27 = sphi 0, %s39
      %s28 = sphi 0, %s35
      %s29 = sphi 0, %s27
      %s30 = sphi 0, %s28
      %s31 = sphi 0, %s29
      %s32 = sphi 0, %s30
      %s44 = sphi 0, %s46
      %s47 = sphi 0, %s44
      %s48 = sphi 0, %s47
      %s64 = sphi 0, %s48
      %s72 = sphi 0, %s74
      %s75 = sphi 0, %s72
      %s76 = sphi 0, %s75
      %s92 = sphi 0, %s76
      %s96 = sphi 0, %s96
      %s98 = sphi 0, %s96
      %s99 = sphi 0, %s98
      %s113 = sphi 0, %s99
      %s117 = sphi 0, %s117
      %s119 = sphi 0, %s117
      %s120 = sphi 0, %s119
      %s134 = sphi 0, %s120
      %s138 = sphi 0, %s138
      %s140 = sphi 0, %s138
      %s141 = sphi 0, %s140
      %s155 = sphi 0, %s141
      %s159 = sphi 0, %s159
      %s161 = sphi 0, %s159
      %s162 = sphi 0, %s161
      %s176 = sphi 0, %s162
      %s182 = sphi 0, %s184
      %s185 = sphi 0, %s182
      %s186 = sphi 0, %s185
      %s202 = sphi 0, %s186
      %s208 = sphi 0, %s210
      %s211 = sphi 0, %s208
      %s212 = sphi 0, %s211
      %s228 = sphi 0, %s212
    $region4: #{tpu_custom_call.1} parent=1 // loop_header_branch
      %23 = sbr.rel (%p21) target = $region8
    $region5: #{tpu_custom_call.1} parent=1 // loop_body
      %s25 = ssub.s32 %s20, 1
      %s26 = ssub.s32 %s20, 2
      %s33 = sadd.s32 1, %s28
      %p34 = scmp.ge.s32.totalorder %s33, 1
      %s35 = scalar_select %p34, 0, %s33
      %s36 = sadd.s32 1, %s27
      %s37 = scalar_select %p34, %s36, %s27
      %p38 = scmp.ge.s32.totalorder %s37, 2
      %s39 = scalar_select %p38, 0, %s37
      %s40 = sadd.s32 %s27, %s28
      %s41 = sadd.s32 %s39, %s35
      %s42 = ssub.s32 %s40, %s41
      %p43 = scmp.eq.s32.totalorder %s42, 0
      %s45 = sadd.s32 %s44, 1
      %s46 = scalar_select %p43, %s44, %s45
      %p49 = pneg %p43
      %p50 = scmp.eq.s32.totalorder %s20, 1
      %p51 = por %p49, %p50
      %p52 = scmp.ne.s32.totalorder %s44, %s47
      %p53 = scmp.eq.s32.totalorder %s20, 0
      %p54 = por %p52, %p53
      %p55 = scmp.ne.s32.totalorder %s44, %s47
      %p56 = scmp.eq.s32.totalorder %s25, 1
      %p57 = por %p55, %p56
      %p58 = scmp.ne.s32.totalorder %s47, %s48
      %p59 = scmp.eq.s32.totalorder %s25, 0
      %p60 = por %p58, %p59
      %p61 = scmp.ne.s32.totalorder %s47, %s48
      %p62 = scmp.eq.s32.totalorder %s26, 1
      %p63 = por %p61, %p62
      %p65 = scmp.ne.s32.totalorder %s48, %s64
      %p66 = scmp.eq.s32.totalorder %s26, 0
      %p67 = por %p65, %p66
      %s68 = sadd.s32 %s27, %s28
      %s69 = sadd.s32 %s39, %s35
      %s70 = ssub.s32 %s68, %s69
      %p71 = scmp.eq.s32.totalorder %s70, 0
      %s73 = sadd.s32 %s72, 1
      %s74 = scalar_select %p71, %s72, %s73
      %p77 = pneg %p71
      %p78 = scmp.eq.s32.totalorder %s20, 1
      %p79 = por %p77, %p78
      %p80 = scmp.ne.s32.totalorder %s72, %s75
      %p81 = scmp.eq.s32.totalorder %s20, 0
      %p82 = por %p80, %p81
      %p83 = scmp.ne.s32.totalorder %s72, %s75
      %p84 = scmp.eq.s32.totalorder %s25, 1
      %p85 = por %p83, %p84
      %p86 = scmp.ne.s32.totalorder %s75, %s76
      %p87 = scmp.eq.s32.totalorder %s25, 0
      %p88 = por %p86, %p87
      %p89 = scmp.ne.s32.totalorder %s75, %s76
      %p90 = scmp.eq.s32.totalorder %s26, 1
      %p91 = por %p89, %p90
      %p93 = scmp.ne.s32.totalorder %s76, %s92
      %p94 = scmp.eq.s32.totalorder %s26, 0
      %p95 = por %p93, %p94
      %s97 = sadd.s32 %s96, 1
      %p100 = scmp.eq.s32.totalorder %s20, 1
      %p101 = scmp.ne.s32.totalorder %s96, %s98
      %p102 = scmp.eq.s32.totalorder %s20, 0
      %p103 = por %p101, %p102
      %p104 = scmp.ne.s32.totalorder %s96, %s98
      %p105 = scmp.eq.s32.totalorder %s25, 1
      %p106 = por %p104, %p105
      %p107 = scmp.ne.s32.totalorder %s98, %s99
      %p108 = scmp.eq.s32.totalorder %s25, 0
      %p109 = por %p107, %p108
      %p110 = scmp.ne.s32.totalorder %s98, %s99
      %p111 = scmp.eq.s32.totalorder %s26, 1
      %p112 = por %p110, %p111
      %p114 = scmp.ne.s32.totalorder %s99, %s113
      %p115 = scmp.eq.s32.totalorder %s26, 0
      %p116 = por %p114, %p115
      %s118 = sadd.s32 %s117, 1
      %p121 = scmp.eq.s32.totalorder %s20, 1
      %p122 = scmp.ne.s32.totalorder %s117, %s119
      %p123 = scmp.eq.s32.totalorder %s20, 0
      %p124 = por %p122, %p123
      %p125 = scmp.ne.s32.totalorder %s117, %s119
      %p126 = scmp.eq.s32.totalorder %s25, 1
      %p127 = por %p125, %p126
      %p128 = scmp.ne.s32.totalorder %s119, %s120
      %p129 = scmp.eq.s32.totalorder %s25, 0
      %p130 = por %p128, %p129
      %p131 = scmp.ne.s32.totalorder %s119, %s120
      %p132 = scmp.eq.s32.totalorder %s26, 1
      %p133 = por %p131, %p132
      %p135 = scmp.ne.s32.totalorder %s120, %s134
      %p136 = scmp.eq.s32.totalorder %s26, 0
      %p137 = por %p135, %p136
      %s139 = sadd.s32 %s138, 1
      %p142 = scmp.eq.s32.totalorder %s20, 1
      %p143 = scmp.ne.s32.totalorder %s138, %s140
      %p144 = scmp.eq.s32.totalorder %s20, 0
      %p145 = por %p143, %p144
      %p146 = scmp.ne.s32.totalorder %s138, %s140
      %p147 = scmp.eq.s32.totalorder %s25, 1
      %p148 = por %p146, %p147
      %p149 = scmp.ne.s32.totalorder %s140, %s141
      %p150 = scmp.eq.s32.totalorder %s25, 0
      %p151 = por %p149, %p150
      %p152 = scmp.ne.s32.totalorder %s140, %s141
      %p153 = scmp.eq.s32.totalorder %s26, 1
      %p154 = por %p152, %p153
      %p156 = scmp.ne.s32.totalorder %s141, %s155
      %p157 = scmp.eq.s32.totalorder %s26, 0
      %p158 = por %p156, %p157
      %s160 = sadd.s32 %s159, 1
      %p163 = scmp.eq.s32.totalorder %s20, 1
      %p164 = scmp.ne.s32.totalorder %s159, %s161
      %p165 = scmp.eq.s32.totalorder %s20, 0
      %p166 = por %p164, %p165
      %p167 = scmp.ne.s32.totalorder %s159, %s161
      %p168 = scmp.eq.s32.totalorder %s25, 1
      %p169 = por %p167, %p168
      %p170 = scmp.ne.s32.totalorder %s161, %s162
      %p171 = scmp.eq.s32.totalorder %s25, 0
      %p172 = por %p170, %p171
      %p173 = scmp.ne.s32.totalorder %s161, %s162
      %p174 = scmp.eq.s32.totalorder %s26, 1
      %p175 = por %p173, %p174
      %p177 = scmp.ne.s32.totalorder %s162, %s176
      %p178 = scmp.eq.s32.totalorder %s26, 0
      %p179 = por %p177, %p178
      %s180 = ssub.s32 %s27, %s39
      %p181 = scmp.eq.s32.totalorder %s180, 0
      %s183 = sadd.s32 %s182, 1
      %s184 = scalar_select %p181, %s182, %s183
      %p187 = pneg %p181
      %p188 = scmp.eq.s32.totalorder %s20, 1
      %p189 = por %p187, %p188
      %p190 = scmp.ne.s32.totalorder %s182, %s185
      %p191 = scmp.eq.s32.totalorder %s20, 0
      %p192 = por %p190, %p191
      %p193 = scmp.ne.s32.totalorder %s182, %s185
      %p194 = scmp.eq.s32.totalorder %s25, 1
      %p195 = por %p193, %p194
      %p196 = scmp.ne.s32.totalorder %s185, %s186
      %p197 = scmp.eq.s32.totalorder %s25, 0
      %p198 = por %p196, %p197
      %p199 = scmp.ne.s32.totalorder %s185, %s186
      %p200 = scmp.eq.s32.totalorder %s26, 1
      %p201 = por %p199, %p200
      %p203 = scmp.ne.s32.totalorder %s186, %s202
      %p204 = scmp.eq.s32.totalorder %s26, 0
      %p205 = por %p203, %p204
      %s206 = ssub.s32 %s27, %s39
      %p207 = scmp.eq.s32.totalorder %s206, 0
      %s209 = sadd.s32 %s208, 1
      %s210 = scalar_select %p207, %s208, %s209
      %p213 = pneg %p207
      %p214 = scmp.eq.s32.totalorder %s20, 1
      %p215 = por %p213, %p214
      %p216 = scmp.ne.s32.totalorder %s208, %s211
      %p217 = scmp.eq.s32.totalorder %s20, 0
      %p218 = por %p216, %p217
      %p219 = scmp.ne.s32.totalorder %s208, %s211
      %p220 = scmp.eq.s32.totalorder %s25, 1
      %p221 = por %p219, %p220
      %p222 = scmp.ne.s32.totalorder %s211, %s212
      %p223 = scmp.eq.s32.totalorder %s25, 0
      %p224 = por %p222, %p223
      %p225 = scmp.ne.s32.totalorder %s211, %s212
      %p226 = scmp.eq.s32.totalorder %s26, 1
      %p227 = por %p225, %p226
      %p229 = scmp.ne.s32.totalorder %s212, %s228
      %p230 = scmp.eq.s32.totalorder %s26, 0
      %p231 = por %p229, %p230
      %p232 = scmp.le.s32.totalorder 1, %s20
      %p233 = scmp.lt.s32.totalorder %s20, 3
      %p234 = pnand %p232, %p233
      %p235 = pneg %p234
      // Predicated region
      $region9: #{tpu_custom_call.1} parent=5 // pred_check
        _
      $region10: #{tpu_custom_call.1} parent=5 // pred_check_branch
        %237 = sbr.rel (%p234) target = $region12
      $region11: #{tpu_custom_call.1} parent=5 // pred_region
        %s238 = ssub.s32 %s20, 1
        // Predicated region
        $region13: #{tpu_custom_call.1} parent=11 // pred_check
          %p239 = pneg %p109
        $region14: #{tpu_custom_call.1} parent=11 // pred_check_branch
          %241 = sbr.rel (%p239) target = $region16
        $region15: #{tpu_custom_call.1} parent=11 // pred_region
          _
        $region16: #{tpu_custom_call.1} parent=11 // pred_fallthru
          _
        // Predicated region
        $region17: #{tpu_custom_call.1} parent=11 // pred_check
          %p242 = pneg %p130
        $region18: #{tpu_custom_call.1} parent=11 // pred_check_branch
          %244 = sbr.rel (%p242) target = $region20
        $region19: #{tpu_custom_call.1} parent=11 // pred_region
          _
        $region20: #{tpu_custom_call.1} parent=11 // pred_fallthru
          _
        // Predicated region
        $region21: #{tpu_custom_call.1} parent=11 // pred_check
          %p245 = pneg %p151
        $region22: #{tpu_custom_call.1} parent=11 // pred_check_branch
          %247 = sbr.rel (%p245) target = $region24
        $region23: #{tpu_custom_call.1} parent=11 // pred_region
          _
        $region24: #{tpu_custom_call.1} parent=11 // pred_fallthru
          _
        // Predicated region
        $region25: #{tpu_custom_call.1} parent=11 // pred_check
          %p248 = pneg %p172
        $region26: #{tpu_custom_call.1} parent=11 // pred_check_branch
          %250 = sbr.rel (%p248) target = $region28
        $region27: #{tpu_custom_call.1} parent=11 // pred_region
          _
        $region28: #{tpu_custom_call.1} parent=11 // pred_fallthru
          _
      $region12: #{tpu_custom_call.1} parent=5 // pred_fallthru
        _
      %p251 = scmp.lt.s32.totalorder %s20, 2
      // Predicated region
      $region29: #{tpu_custom_call.1} parent=5 // pred_check
        %p252 = pneg %p251
      $region30: #{tpu_custom_call.1} parent=5 // pred_check_branch
        %254 = sbr.rel (%p252) target = $region32
      $region31: #{tpu_custom_call.1} parent=5 // pred_region
        // Predicated region
        $region33: #{tpu_custom_call.1} parent=31 // pred_check
          %p255 = pneg %p54
        $region34: #{tpu_custom_call.1} parent=31 // pred_check_branch
          %257 = sbr.rel (%p255) target = $region36
        $region35: #{tpu_custom_call.1} parent=31 // pred_region
          %s258 = sand.u32 %s44, 1
          %s259 = sand.u32 %s44, 1
          %s260 = smul.addr %s259, 16
          %s261 = scalar_lea.vmem [#allocation2], %s260
          %s262 = sadd.s32 %s27, %s28
          %s263 = smul.addr %s262, 8
          %s264 = scalar_lea.vmem %s0, %s263
          // Predicated region
          $region37: #{tpu_custom_call.1} parent=35 // pred_check
            _
          $region38: #{tpu_custom_call.1} parent=35 // pred_check_branch
            %266 = sbr.rel (0) target = $region40
          $region39: #{tpu_custom_call.1} parent=35 // pred_region
            // Predicated region
            $region41: #{tpu_custom_call.1} parent=39 // pred_check
              _
            $region42: #{tpu_custom_call.1} parent=39 // pred_check_branch
              %268 = sbr.rel (0) target = $region44
            $region43: #{tpu_custom_call.1} parent=39 // pred_region
              // Predicated region
              $region56: #{tpu_custom_call.1} parent=43 // pred_check
                _
              $region57: #{tpu_custom_call.1} parent=43 // pred_check_branch
                %285 = sbr.rel (0) target = $region59
              $region58: #{tpu_custom_call.1} parent=43 // pred_region
                loop: start=0, step=1, limit=1
                $region60: #{tpu_custom_call.1} parent=58 // loop_pre_header
                  _
                $region61: #{tpu_custom_call.1} parent=58 // loop_header
                  %s287 = sphi 0, %s291
                  %p288 = scmp.ge.s32.totalorder %s287, 1
                  %s292 = sphi %s264, %s264
                  %s293 = sphi %s261, %s261
                $region62: #{tpu_custom_call.1} parent=58 // loop_header_branch
                  %290 = sbr.rel (%p288) target = $region66
                $region63: #{tpu_custom_call.1} parent=58 // loop_body
                  %v294 = vld [vmem:[%s292] sm:$0xff]
                  %295 = vst [vmem:[%s293] sm:$0xff] %v294
                  %v296 = vld [vmem:[%s292 + $0x10] sm:$0xff]
                  %297 = vst [vmem:[%s293 + $0x8] sm:$0xff] %v296
                $region64: #{tpu_custom_call.1} parent=58 // loop_footer
                  %s291 = sadd.s32 1, %s287
                $region65: #{tpu_custom_call.1} parent=58 // loop_footer_branch
                  %286 = sbr.rel target = $region61
                $region66: #{tpu_custom_call.1} parent=58 // loop_exit
                  _
              $region59: #{tpu_custom_call.1} parent=43 // pred_fallthru
                _
              // Predicated region
              $region67: #{tpu_custom_call.1} parent=43 // pred_check
                _
              $region68: #{tpu_custom_call.1} parent=43 // pred_check_branch
                %299 = sbr.rel target = $region70
              $region69: #{tpu_custom_call.1} parent=43 // pred_region
                _
              $region70: #{tpu_custom_call.1} parent=43 // pred_fallthru
                _
            $region44: #{tpu_custom_call.1} parent=39 // pred_fallthru
              _
            // Predicated region
            $region45: #{tpu_custom_call.1} parent=39 // pred_check
              _
            $region46: #{tpu_custom_call.1} parent=39 // pred_check_branch
              %270 = sbr.rel target = $region48
            $region47: #{tpu_custom_call.1} parent=39 // pred_region
              loop: start=0, step=1, limit=1
              $region49: #{tpu_custom_call.1} parent=47 // loop_pre_header
                _
              $region50: #{tpu_custom_call.1} parent=47 // loop_header
                %s273 = sphi 0, %s277
                %p274 = scmp.ge.s32.totalorder %s273, 1
                %s278 = sphi %s264, %s264
                %s279 = sphi %s261, %s261
              $region51: #{tpu_custom_call.1} parent=47 // loop_header_branch
                %276 = sbr.rel (%p274) target = $region55
              $region52: #{tpu_custom_call.1} parent=47 // loop_body
                %v280 = vld [vmem:[%s278] sm:$0xff]
                %281 = vst [vmem:[%s279] sm:$0xff] %v280
                %v282 = vld [vmem:[%s278 + $0x10] sm:$0xff]
                %283 = vst [vmem:[%s279 + $0x8] sm:$0xff] %v282
              $region53: #{tpu_custom_call.1} parent=47 // loop_footer
                %s277 = sadd.s32 1, %s273
              $region54: #{tpu_custom_call.1} parent=47 // loop_footer_branch
                %272 = sbr.rel target = $region50
              $region55: #{tpu_custom_call.1} parent=47 // loop_exit
                _
            $region48: #{tpu_custom_call.1} parent=39 // pred_fallthru
              _
          $region40: #{tpu_custom_call.1} parent=35 // pred_fallthru
            _
          %300 = vnop
        $region36: #{tpu_custom_call.1} parent=31 // pred_fallthru
          _
        // Predicated region
        $region71: #{tpu_custom_call.1} parent=31 // pred_check
          %p301 = pneg %p82
        $region72: #{tpu_custom_call.1} parent=31 // pred_check_branch
          %303 = sbr.rel (%p301) target = $region74
        $region73: #{tpu_custom_call.1} parent=31 // pred_region
          %s304 = sand.u32 %s72, 1
          %s305 = sand.u32 %s72, 1
          %s306 = smul.addr %s305, 4
          %s307 = scalar_lea.vmem [#allocation3], %s306
          %s308 = sadd.s32 %s27, %s28
          %s309 = smul.addr %s308, 2
          %s310 = scalar_lea.vmem %s1, %s309
          // Predicated region
          $region75: #{tpu_custom_call.1} parent=73 // pred_check
            _
          $region76: #{tpu_custom_call.1} parent=73 // pred_check_branch
            %312 = sbr.rel (0) target = $region78
          $region77: #{tpu_custom_call.1} parent=73 // pred_region
            // Predicated region
            $region79: #{tpu_custom_call.1} parent=77 // pred_check
              _
            $region80: #{tpu_custom_call.1} parent=77 // pred_check_branch
              %314 = sbr.rel target = $region82
            $region81: #{tpu_custom_call.1} parent=77 // pred_region
              // Predicated region
              $region94: #{tpu_custom_call.1} parent=81 // pred_check
                _
              $region95: #{tpu_custom_call.1} parent=81 // pred_check_branch
                %331 = sbr.rel (0) target = $region97
              $region96: #{tpu_custom_call.1} parent=81 // pred_region
                loop: start=0, step=1, limit=1
                $region98: #{tpu_custom_call.1} parent=96 // loop_pre_header
                  _
                $region99: #{tpu_custom_call.1} parent=96 // loop_header
                  %s334 = sphi 0, %s338
                  %p335 = scmp.ge.s32.totalorder %s334, 1
                  %s339 = sphi %s310, %s310
                  %s340 = sphi %s307, %s307
                $region100: #{tpu_custom_call.1} parent=96 // loop_header_branch
                  %337 = sbr.rel (%p335) target = $region104
                $region101: #{tpu_custom_call.1} parent=96 // loop_body
                  %v341 = vld [vmem:[%s339] sm:$0x3]
                  %342 = vst [vmem:[%s340] sm:$0x3] %v341
                  %v343 = vld [vmem:[%s339 + $0x4] sm:$0x3]
                  %344 = vst [vmem:[%s340 + $0x2] sm:$0x3] %v343
                $region102: #{tpu_custom_call.1} parent=96 // loop_footer
                  %s338 = sadd.s32 1, %s334
                $region103: #{tpu_custom_call.1} parent=96 // loop_footer_branch
                  %333 = sbr.rel target = $region99
                $region104: #{tpu_custom_call.1} parent=96 // loop_exit
                  _
              $region97: #{tpu_custom_call.1} parent=81 // pred_fallthru
                _
            $region82: #{tpu_custom_call.1} parent=77 // pred_fallthru
              _
            // Predicated region
            $region83: #{tpu_custom_call.1} parent=77 // pred_check
              _
            $region84: #{tpu_custom_call.1} parent=77 // pred_check_branch
              %316 = sbr.rel (0) target = $region86
            $region85: #{tpu_custom_call.1} parent=77 // pred_region
              loop: start=0, step=1, limit=1
              $region87: #{tpu_custom_call.1} parent=85 // loop_pre_header
                _
              $region88: #{tpu_custom_call.1} parent=85 // loop_header
                %s319 = sphi 0, %s323
                %p320 = scmp.ge.s32.totalorder %s319, 1
                %s324 = sphi %s310, %s310
                %s325 = sphi %s307, %s307
              $region89: #{tpu_custom_call.1} parent=85 // loop_header_branch
                %322 = sbr.rel (%p320) target = $region93
              $region90: #{tpu_custom_call.1} parent=85 // loop_body
                %v326 = vld [vmem:[%s324] sm:$0x3]
                %327 = vst [vmem:[%s325] sm:$0x3] %v326
                %v328 = vld [vmem:[%s324 + $0x4] sm:$0x3]
                %329 = vst [vmem:[%s325 + $0x2] sm:$0x3] %v328
              $region91: #{tpu_custom_call.1} parent=85 // loop_footer
                %s323 = sadd.s32 1, %s319
              $region92: #{tpu_custom_call.1} parent=85 // loop_footer_branch
                %318 = sbr.rel target = $region88
              $region93: #{tpu_custom_call.1} parent=85 // loop_exit
                _
            $region86: #{tpu_custom_call.1} parent=77 // pred_fallthru
              _
          $region78: #{tpu_custom_call.1} parent=73 // pred_fallthru
            _
          %345 = vnop
        $region74: #{tpu_custom_call.1} parent=31 // pred_fallthru
          _
      $region32: #{tpu_custom_call.1} parent=5 // pred_fallthru
        _
      %p346 = scmp.le.s32.totalorder 1, %s20
      %p347 = scmp.lt.s32.totalorder %s20, 3
      %p348 = pnand %p346, %p347
      %p349 = pneg %p348
      // Predicated region
      $region105: #{tpu_custom_call.1} parent=5 // pred_check
        _
      $region106: #{tpu_custom_call.1} parent=5 // pred_check_branch
        %351 = sbr.rel (%p348) target = $region108
      $region107: #{tpu_custom_call.1} parent=5 // pred_region
        %s352 = ssub.s32 %s20, 1
        %s353 = sand.u32 %s47, 1
        %s354 = sand.u32 %s47, 1
        %s355 = smul.addr %s354, 16
        %s356 = scalar_lea.vmem [#allocation2], %s355
        // Predicated region
        $region109: #{tpu_custom_call.1} parent=107 // pred_check
          %p357 = pneg %p60
        $region110: #{tpu_custom_call.1} parent=107 // pred_check_branch
          %359 = sbr.rel (%p357) target = $region112
        $region111: #{tpu_custom_call.1} parent=107 // pred_region
          _
        $region112: #{tpu_custom_call.1} parent=107 // pred_fallthru
          _
        %s360 = sand.u32 %s75, 1
        %s361 = sand.u32 %s75, 1
        %s362 = smul.addr %s361, 4
        %s363 = scalar_lea.vmem [#allocation3], %s362
        // Predicated region
        $region113: #{tpu_custom_call.1} parent=107 // pred_check
          %p364 = pneg %p88
        $region114: #{tpu_custom_call.1} parent=107 // pred_check_branch
          %366 = sbr.rel (%p364) target = $region116
        $region115: #{tpu_custom_call.1} parent=107 // pred_region
          _
        $region116: #{tpu_custom_call.1} parent=107 // pred_fallthru
          _
        %s367 = sand.u32 %s47, 1
        %s368 = sand.u32 %s47, 1
        %s369 = smul.addr %s368, 16
        %s370 = scalar_lea.vmem [#allocation2], %s369
        %p371 = pneg %p60
        %p372 = pneg %p57
        %s373 = sand.u32 %s75, 1
        %s374 = sand.u32 %s75, 1
        %s375 = smul.addr %s374, 4
        %s376 = scalar_lea.vmem [#allocation3], %s375
        %p377 = pneg %p88
        %p378 = pneg %p85
        %p379 = pneg %p109
        %p380 = pneg %p106
        %p381 = pneg %p130
        %p382 = pneg %p127
        %p383 = pneg %p151
        %p384 = pneg %p148
        %p385 = pneg %p172
        %p386 = pneg %p169
        %p387 = pneg %p198
        %p388 = pneg %p195
        %s389 = sand.u32 %s185, 1
        %s390 = scalar_lea.sflag [#allocation5], %s389
        %s391 = sand.u32 %s185, 1
        %s392 = smul.addr %s391, 16
        %s393 = scalar_lea.vmem [#allocation4], %s392
        %p394 = pneg %p224
        %p395 = pneg %p221
        %s396 = sand.u32 %s211, 1
        %s397 = scalar_lea.sflag [#allocation7], %s396
        %s398 = sand.u32 %s211, 1
        %s399 = smul.addr %s398, 16
        %s400 = scalar_lea.vmem [#allocation6], %s399
        %s401 = sadd.s32 %s29, %s30
        %s402 = sadd.s32 %s29, %s30
        %v405 = vlaneseq
        %v406 = vand.u32 %v405, 127
        %p407 = scmp.eq.s32.totalorder %s30, 0
        // Predicated region
        $region117: #{tpu_custom_call.1} parent=107 // pred_check
          %p408 = pneg %p407
        $region118: #{tpu_custom_call.1} parent=107 // pred_check_branch
          %410 = sbr.rel (%p408) target = $region120
        $region119: #{tpu_custom_call.1} parent=107 // pred_region
          %vm411 = vcmask 130048
          %412 = vst.msk [vmem:[%s393] sm:$0xff] %vm411, -inf
          %413 = vst.msk [vmem:[%s393 + $0x8] sm:$0xff] %vm411, -inf
          %v414 = vadd.s32 %v406, 1
          %v415 = vsub.s32 0, %v414
          %416 = vst.msk [vmem:[%s400] sm:$0xff] %vm411, %v415
          %417 = vst.msk [vmem:[%s400 + $0x8] sm:$0xff] %vm411, %v415
        $region120: #{tpu_custom_call.1} parent=107 // pred_fallthru
          _
        %v418 = vld [vmem:[%s356] sm:$0xff]
        %v419 = vld [vmem:[%s356 + $0x8] sm:$0xff]
        %v420 = vld [vmem:[%s363] sm:$0x3]
        %v421 = vld [vmem:[%s363 + $0x2] sm:$0x3]
        %vm422 = vnez %v420
        %vm423 = vnez %v421
        %vm424 = vcmp.gt.f32.partialorder %v418, 0.0
        %vm425 = vcmp.gt.f32.partialorder %v419, 0.0
        %v426 = vld [vmem:[%s3] sm:$0xff]
        %v427 = vld [vmem:[%s3 + $0x8] sm:$0xff]
        %v428 = vld [vmem:[%s2] sm:$0xff]
        %v429 = vld [vmem:[%s2 + $0x8] sm:$0xff]
        %431 = vset.pattern.permute.xlu0 0
        %432 = vperm.xlu0 %431, %v426
        %v433 = vpop.permute.xlu0 %432
        %436 = vset.pattern.permute.xlu0 0
        %437 = vperm.xlu0 %436, %v427
        %v438 = vpop.permute.xlu0 %437
        %441 = vset.pattern.permute.xlu0 0
        %442 = vperm.xlu0 %441, %v428
        %v443 = vpop.permute.xlu0 %442
        %446 = vset.pattern.permute.xlu0 0
        %447 = vperm.xlu0 %446, %v429
        %v448 = vpop.permute.xlu0 %447
        %v450 = vsel %vm424, %v433, %v443
        %v451 = vsel %vm425, %v438, %v448
        %v452 = vsel %vm422, 16843009, 0
        %v453 = vsel %vm423, 16843009, 0
        %v454 = vunpack.c.0.s8 %v452
        %v455 = vunpack.c.0.s8 %v453
        %vm456 = vcmp.ne.s32.totalorder %v454, 0
        %vm457 = vcmp.ne.s32.totalorder %v455, 0
        %v458 = vsel %vm456, %v450, 1.0
        %v459 = vsel %vm457, %v451, 1.0
        %v460 = vmul.f32 %v418, %v458
        %v461 = vmul.f32 %v419, %v459
        %v462 = vld [vmem:[%s4] sm:$0xff]
        %v463 = vld [vmem:[%s4 + $0x8] sm:$0xff]
        %465 = vset.pattern.permute.xlu0 0
        %466 = vperm.xlu0 %465, %v462
        %v467 = vpop.permute.xlu0 %466
        %470 = vset.pattern.permute.xlu0 0
        %471 = vperm.xlu0 %470, %v463
        %v472 = vpop.permute.xlu0 %471
        %v474 = vmul.f32 %v460, %v467
        %v475 = vmul.f32 %v461, %v472
        %v476 = vld [vmem:[%s393] sm:$0xff]
        %v477 = vld [vmem:[%s393 + $0x8] sm:$0xff]
        %vm478 = vcmask 130048
        %v479 = vsel %vm478, %v476, inf
        %480 = vmin.xlane.f32.xlu0 %v479
        %v481 = vpop.xlane.xlu0 %480
        %v482 = vsel %vm478, %v477, inf
        %483 = vmin.xlane.f32.xlu0 %v482
        %v484 = vpop.xlane.xlu0 %483
        %485 = vmax.xlane.f32.xlu0 %v474
        %v486 = vpop.xlane.xlu0 %485
        %487 = vmax.xlane.f32.xlu0 %v475
        %v488 = vpop.xlane.xlu0 %487
        %vm489 = vcmp.gt.f32.partialorder %v486, %v481
        %vm490 = vcmp.gt.f32.partialorder %v488, %v484
        %v491 = vsel %vm489, 1, 0
        %v492 = vsel %vm490, 1, 0
        %vm493 = vcmp.gt.s32.totalorder %v491, %v492
        %v494 = vsel %vm493, %v491, %v492
        %v495 = vrot.slane %v494, 4
        %vm496 = vcmp.gt.s32.totalorder %v494, %v495
        %v497 = vsel %vm496, %v494, %v495
        %v498 = vrot.slane %v497, 2
        %vm499 = vcmp.gt.s32.totalorder %v497, %v498
        %v500 = vsel %vm499, %v497, %v498
        %v501 = vrot.slane %v500, 1
        %vm502 = vcmp.gt.s32.totalorder %v500, %v501
        %v503 = vsel %vm502, %v500, %v501
        %s504 = vtos %v503
        %p505 = scmp.gt.s32.totalorder %s504, 0
        // Predicated region
        $region121: #{tpu_custom_call.1} parent=107 // pred_check
          %p506 = pneg %p505
        $region122: #{tpu_custom_call.1} parent=107 // pred_check_branch
          %508 = sbr.rel (%p506) target = $region124
        $region123: #{tpu_custom_call.1} parent=107 // pred_region
          %v509 = vld [vmem:[%s5] sm:$0xff]
          %v510 = vld [vmem:[%s5 + $0x8] sm:$0xff]
          %s511 = sadd.s32 %s29, %s30
          %s512 = smul.u32 %s511, 128
          %v513 = vstv %s512
          %v514 = vadd.s32 %v509, %v513
          %v515 = vadd.s32 %v510, %v513
          %516 = vset.pattern.permute.xlu0 0
          %517 = vperm.xlu0 %516, %v514
          %v518 = vpop.permute.xlu0 %517
          %519 = vset.pattern.permute.xlu0 0
          %520 = vperm.xlu0 %519, %v515
          %v521 = vpop.permute.xlu0 %520
          %v522 = vadd.s32 %v518, %v406
          %v523 = vadd.s32 %v521, %v406
          %v524 = vld [vmem:[%s400] sm:$0xff]
          %v525 = vld [vmem:[%s400 + $0x8] sm:$0xff]
          %v526 = vld [vmem:[%s393] sm:$0xff]
          %v527 = vld [vmem:[%s393 + $0x8] sm:$0xff]
          loop: start=0, step=1, limit=16
          $region125: #{tpu_custom_call.1} parent=123 // loop_pre_header
            _
          $region126: #{tpu_custom_call.1} parent=123 // loop_header
            %s529 = sphi 0, %s533
            %p530 = scmp.ge.s32.totalorder %s529, 16
            %v534 = vphi %v526, %v632
            %v535 = vphi %v527, %v633
            %v536 = vphi %v474, %v636
            %v537 = vphi %v475, %v637
            %v538 = vphi -inf, %v626
            %v539 = vphi -inf, %v627
            %v540 = vphi 0, %v628
            %v541 = vphi 0, %v629
          $region127: #{tpu_custom_call.1} parent=123 // loop_header_branch
            %532 = sbr.rel (%p530) target = $region131
          $region128: #{tpu_custom_call.1} parent=123 // loop_body
            %v542 = vsel %vm478, %v534, -inf
            %543 = vmax.xlane.f32.xlu0 %v542
            %v544 = vpop.xlane.xlu0 %543
            %v545 = vsel %vm478, %v535, -inf
            %546 = vmax.xlane.f32.xlu0 %v545
            %v547 = vpop.xlane.xlu0 %546
            %548 = vmax.xlane.f32.xlu0 %v536
            %v549 = vpop.xlane.xlu0 %548
            %550 = vmax.xlane.f32.xlu0 %v537
            %v551 = vpop.xlane.xlu0 %550
            %v552 = vmax.f32 %v544, %v549
            %v553 = vmax.f32 %v547, %v551
            %vm554 = vcmp.eq.f32.partialorder %v534, %v552
            %vm555 = vcmp.eq.f32.partialorder %v535, %v553
            %v556 = vsel %vm554, %v524, 2147483647
            %v557 = vsel %vm555, %v525, 2147483647
            %v558 = vsel %vm478, %v556, 2147483647
            %v559 = vand.u32 %v558, 65535
            %v560 = vshra.s32 %v558, 16
            %v561 = vcvt.s32.f32 %v559
            %v562 = vcvt.s32.f32 %v560
            %563 = vmin.xlane.f32.xlu0 %v562
            %v564 = vpop.xlane.xlu0 %563
            %vm565 = vcmp.eq.f32.partialorder %v562, %v564
            %v566 = vsel %vm565, %v561, inf
            %567 = vmin.xlane.f32.xlu0 %v566
            %v568 = vpop.xlane.xlu0 %567
            %v569 = vcvt.f32.s32 %v568
            %v570 = vcvt.f32.s32 %v564
            %v571 = vshll.u32 %v570, 16
            %v572 = vadd.s32 %v571, %v569
            %v573 = vsel %vm478, %v557, 2147483647
            %v574 = vand.u32 %v573, 65535
            %v575 = vshra.s32 %v573, 16
            %v576 = vcvt.s32.f32 %v574
            %v577 = vcvt.s32.f32 %v575
            %578 = vmin.xlane.f32.xlu0 %v577
            %v579 = vpop.xlane.xlu0 %578
            %vm580 = vcmp.eq.f32.partialorder %v577, %v579
            %v581 = vsel %vm580, %v576, inf
            %582 = vmin.xlane.f32.xlu0 %v581
            %v583 = vpop.xlane.xlu0 %582
            %v584 = vcvt.f32.s32 %v583
            %v585 = vcvt.f32.s32 %v579
            %v586 = vshll.u32 %v585, 16
            %v587 = vadd.s32 %v586, %v584
            %vm588 = vcmp.eq.f32.partialorder %v536, %v552
            %vm589 = vcmp.eq.f32.partialorder %v537, %v553
            %v590 = vsel %vm588, %v522, 2147483647
            %v591 = vsel %vm589, %v523, 2147483647
            %v592 = vand.u32 %v590, 65535
            %v593 = vshra.s32 %v590, 16
            %v594 = vcvt.s32.f32 %v592
            %v595 = vcvt.s32.f32 %v593
            %596 = vmin.xlane.f32.xlu0 %v595
            %v597 = vpop.xlane.xlu0 %596
            %vm598 = vcmp.eq.f32.partialorder %v595, %v597
            %v599 = vsel %vm598, %v594, inf
            %600 = vmin.xlane.f32.xlu0 %v599
            %v601 = vpop.xlane.xlu0 %600
            %v602 = vcvt.f32.s32 %v601
            %v603 = vcvt.f32.s32 %v597
            %v604 = vshll.u32 %v603, 16
            %v605 = vadd.s32 %v604, %v602
            %v606 = vand.u32 %v591, 65535
            %v607 = vshra.s32 %v591, 16
            %v608 = vcvt.s32.f32 %v606
            %v609 = vcvt.s32.f32 %v607
            %610 = vmin.xlane.f32.xlu0 %v609
            %v611 = vpop.xlane.xlu0 %610
            %vm612 = vcmp.eq.f32.partialorder %v609, %v611
            %v613 = vsel %vm612, %v608, inf
            %614 = vmin.xlane.f32.xlu0 %v613
            %v615 = vpop.xlane.xlu0 %614
            %v616 = vcvt.f32.s32 %v615
            %v617 = vcvt.f32.s32 %v611
            %v618 = vshll.u32 %v617, 16
            %v619 = vadd.s32 %v618, %v616
            %vm620 = vcmp.lt.s32.totalorder %v572, %v605
            %v621 = vsel %vm620, %v572, %v605
            %vm622 = vcmp.lt.s32.totalorder %v587, %v619
            %v623 = vsel %vm622, %v587, %v619
            %v624 = vstv %s529
            %vm625 = vcmp.eq.s32.totalorder %v406, %v624
            %v626 = vsel %vm625, %v552, %v538
            %v627 = vsel %vm625, %v553, %v539
            %v628 = vsel %vm625, %v621, %v540
            %v629 = vsel %vm625, %v623, %v541
            %vm630 = vcmp.eq.s32.totalorder %v524, %v621
            %vm631 = vcmp.eq.s32.totalorder %v525, %v623
            %v632 = vsel %vm630, -inf, %v534
            %v633 = vsel %vm631, -inf, %v535
            %vm634 = vcmp.eq.s32.totalorder %v522, %v621
            %vm635 = vcmp.eq.s32.totalorder %v523, %v623
            %v636 = vsel %vm634, -inf, %v536
            %v637 = vsel %vm635, -inf, %v537
          $region129: #{tpu_custom_call.1} parent=123 // loop_footer
            %s533 = sadd.s32 1, %s529
          $region130: #{tpu_custom_call.1} parent=123 // loop_footer_branch
            %528 = sbr.rel target = $region126
          $region131: #{tpu_custom_call.1} parent=123 // loop_exit
            _
          %638 = vst.msk [vmem:[%s393] sm:$0xff] %vm478, %v538
          %639 = vst.msk [vmem:[%s393 + $0x8] sm:$0xff] %vm478, %v539
          %640 = vst.msk [vmem:[%s400] sm:$0xff] %vm478, %v540
          %641 = vst.msk [vmem:[%s400 + $0x8] sm:$0xff] %vm478, %v541
        $region124: #{tpu_custom_call.1} parent=107 // pred_fallthru
          _
        %s642 = sand.u32 %s185, 1
        %s643 = scalar_lea.sflag [#allocation5], %s642
        %s644 = sand.u32 %s185, 1
        %s645 = smul.addr %s644, 16
        %s646 = scalar_lea.vmem [#allocation4], %s645
        %s647 = sand.u32 %s211, 1
        %s648 = scalar_lea.sflag [#allocation7], %s647
        %s649 = sand.u32 %s211, 1
        %s650 = smul.addr %s649, 16
        %s651 = scalar_lea.vmem [#allocation6], %s650
        // Predicated region
        $region132: #{tpu_custom_call.1} parent=107 // pred_check
          %p652 = pneg %p195
        $region133: #{tpu_custom_call.1} parent=107 // pred_check_branch
          %654 = sbr.rel (%p652) target = $region135
        $region134: #{tpu_custom_call.1} parent=107 // pred_region
          %s656 = ssub.s32 256, 256
          %657 = vsyncadd %s643, %s656
          %s658 = smul.addr %s29, 2
          %s659 = smul.addr %s658, 128
          %s660 = scalar_lea.hbm %s6, %s659
          %s661 = sshll.u32 %s646, 4
          %s662 = int_to_ptr.vmem [resolvable:$true] %s661
          %667 = dma.vmem_to_hbm [thread:$0]  %s662, 256, %s660, %s643, 128, 128, 8
        $region135: #{tpu_custom_call.1} parent=107 // pred_fallthru
          _
        // Predicated region
        $region136: #{tpu_custom_call.1} parent=107 // pred_check
          %p668 = pneg %p221
        $region137: #{tpu_custom_call.1} parent=107 // pred_check_branch
          %670 = sbr.rel (%p668) target = $region139
        $region138: #{tpu_custom_call.1} parent=107 // pred_region
          %s672 = ssub.s32 256, 256
          %673 = vsyncadd %s648, %s672
          %s674 = smul.addr %s29, 2
          %s675 = smul.addr %s674, 128
          %s676 = scalar_lea.hbm %s7, %s675
          %s677 = sshll.u32 %s651, 4
          %s678 = int_to_ptr.vmem [resolvable:$true] %s677
          %683 = dma.vmem_to_hbm [thread:$0]  %s678, 256, %s676, %s648, 128, 128, 8
        $region139: #{tpu_custom_call.1} parent=107 // pred_fallthru
          _
      $region108: #{tpu_custom_call.1} parent=5 // pred_fallthru
        _
      %p684 = scmp.le.s32.totalorder 2, %s20
      // Predicated region
      $region140: #{tpu_custom_call.1} parent=5 // pred_check
        %p685 = pneg %p684
      $region141: #{tpu_custom_call.1} parent=5 // pred_check_branch
        %687 = sbr.rel (%p685) target = $region143
      $region142: #{tpu_custom_call.1} parent=5 // pred_region
        %s688 = ssub.s32 %s20, 2
        // Predicated region
        $region144: #{tpu_custom_call.1} parent=142 // pred_check
          %p689 = pneg %p201
        $region145: #{tpu_custom_call.1} parent=142 // pred_check_branch
          %691 = sbr.rel (%p689) target = $region147
        $region146: #{tpu_custom_call.1} parent=142 // pred_region
          %s692 = sand.u32 %s186, 1
          %s693 = scalar_lea.sflag [#allocation5], %s692
          %s694 = sand.u32 %s186, 1
          %s695 = smul.addr %s694, 16
          %s696 = scalar_lea.vmem [#allocation4], %s695
          %697 = dma.done %s693, 256
        $region147: #{tpu_custom_call.1} parent=142 // pred_fallthru
          _
        // Predicated region
        $region148: #{tpu_custom_call.1} parent=142 // pred_check
          %p698 = pneg %p227
        $region149: #{tpu_custom_call.1} parent=142 // pred_check_branch
          %700 = sbr.rel (%p698) target = $region151
        $region150: #{tpu_custom_call.1} parent=142 // pred_region
          %s701 = sand.u32 %s212, 1
          %s702 = scalar_lea.sflag [#allocation7], %s701
          %s703 = sand.u32 %s212, 1
          %s704 = smul.addr %s703, 16
          %s705 = scalar_lea.vmem [#allocation6], %s704
          %706 = dma.done %s702, 256
        $region151: #{tpu_custom_call.1} parent=142 // pred_fallthru
          _
      $region143: #{tpu_custom_call.1} parent=5 // pred_fallthru
        _
    $region6: #{tpu_custom_call.1} parent=1 // loop_footer
      %s24 = sadd.s32 1, %s20
    $region7: #{tpu_custom_call.1} parent=1 // loop_footer_branch
      %19 = sbr.rel target = $region3
    $region8: #{tpu_custom_call.1} parent=1 // loop_exit
      _
    %707 = vsyncpa [#allocation5], 1
    %s708 = scalar_lea.sflag [#allocation5], 1
    %709 = vsyncpa %s708, 1
    %710 = vsyncpa [#allocation7], 1
    %s711 = scalar_lea.sflag [#allocation7], 1
    %712 = vsyncpa %s711, 1

</llo_original>
